<compile_context>
chip_gen: v7x
topology: tpu7x:2x2x1
jax: 0.10.0
libtpu: 0.0.40
codegen_flags: <defaults>
</compile_context>

<pallas_src>
import math
import numpy as np

import jax
import jax.numpy as jnp
from jax.experimental import pallas as pl
from jax.experimental.pallas import tpu as pltpu


# ----------------------------------------------------------------------------
# Parameter / buffer construction (deterministic, mirrors nn.Module.__init__)
# ----------------------------------------------------------------------------
def build_pos_embedding(ft_size: int, time_len: int, att_type: str) -> jnp.ndarray:
    assert ft_size % 2 == 0, "ft_size must be even (same limitation as the PyTorch module)"
    N = 22
    T = time_len
    if att_type in ("spatial", "mask_s"):
        pos = [joint for _t in range(T) for joint in range(N)]
    elif att_type in ("temporal", "mask_t"):
        pos = list(range(N * T))
    else:
        raise ValueError(f"unknown att_type: {att_type}")

    position = np.asarray(pos, dtype=np.float32)[:, None]                  # (N*T, 1)
    division_term = np.exp(
        np.arange(0, ft_size, 2, dtype=np.float32) * (-math.log(10000.0) / ft_size)
    )                                                                       # (ft_size//2,)

    pe = np.zeros((N * T, ft_size), dtype=np.float32)
    pe[:, 0::2] = np.sin(position * division_term)
    pe[:, 1::2] = np.cos(position * division_term)
    return jnp.asarray(pe[None, :, :])                                      # (1, N*T, ft_size)


# ----------------------------------------------------------------------------
# Pallas kernel: lane-dense elementwise add (pe row broadcast over batch rows)
# ----------------------------------------------------------------------------
def _pe_add_kernel(x_ref, pe_ref, o_ref):
    # x_ref / o_ref: (TB, SF_pad) block for the current batch chunk.
    # pe_ref:        (1, SF_pad) positional row, VMEM-resident across the grid.
    # HBM-bandwidth bound: the sublane broadcast of pe is free VPU filler.
    o_ref[...] = x_ref[...] + pe_ref[...]


# ----------------------------------------------------------------------------
# Per-generation tuning
# ----------------------------------------------------------------------------
def _tpu_tuning():
    """Return (target_block_bytes, vmem_limit_bytes, min_grid_steps)."""
    kind = ""
    try:
        kind = jax.devices()[0].device_kind.lower()
    except Exception:
        pass
    if "v5 lite" in kind or "v5lite" in kind or "v5e" in kind:
        # v5e: 2 MiB blocks are already ~94% of the 0.82 TB/s roofline; keep the
        # double-buffered in+out footprint (~8 MiB) under the scoped-VMEM limit
        # with comfortable headroom.
        return 2 << 20, 24 << 20, 1
    if "v7" in kind:
        # v7x: 3.2 TB/s HBM makes the ~0.35 us/step overhead relatively expensive;
        # 8 MiB blocks (double-buffered in+out ~32 MiB) need an explicit vmem limit
        # (physical VMEM is 64 MiB/TC).  Also require >=2 grid steps so both
        # TensorCores get work.
        return 8 << 20, 48 << 20, 2
    # v6e (and default): 4 MiB blocks -> ~16 MiB double-buffered, under the 32 MiB
    # scoped default, but set the limit explicitly anyway.
    return 4 << 20, 32 << 20, 1


def _choose_tb(B: int, row_bytes: int, itemsize: int, target_bytes: int, min_steps: int) -> int:
    """Batch rows per block, dtype-aware sublane rounding, optional >=min_steps grid."""
    sub = {4: 8, 2: 16, 1: 32}.get(itemsize, 8)     # sublane multiple per element width
    if B <= sub:
        return B                                    # full-batch block (always legal)
    tb = max(1, target_bytes // max(1, row_bytes))
    if min_steps > 1:
        # Cap so the grid has at least `min_steps` blocks (keeps both v7x TCs busy).
        cap = ((-(-B // min_steps) + sub - 1) // sub) * sub
        tb = min(tb, cap)
    if tb >= B:
        return B
    return max(sub, (tb // sub) * sub)


# ----------------------------------------------------------------------------
# Forward wrapper
# ----------------------------------------------------------------------------
def positional_encoding_forward(x: jnp.ndarray, pos_embedding: jnp.ndarray) -> jnp.ndarray:
    """x: (B, S, F);  pos_embedding: (1, N*T, F), S <= N*T.  Returns x + pe[:, :S]."""
    B, S, F = x.shape
    NT = pos_embedding.shape[1]
    assert S <= NT, f"sequence length {S} exceeds positional table length {NT}"
    assert pos_embedding.shape[2] == F, "feature size mismatch between x and pos_embedding"

    target_bytes, vmem_limit, min_steps = _tpu_tuning()

    SF = S * F
    SF_pad = ((SF + 127) // 128) * 128   # keep lane dim 128-aligned -> unmasked vst

    # Layout plumbing (init-time / not the hot path): lane-dense (B, S*F) view.
    # NOTE: pe is cast to x.dtype before the add; output dtype matches x (PyTorch
    # would promote the add to f32 for sub-f32 x — tiny numeric divergence).
    pe_row = pos_embedding[0, :S, :].astype(x.dtype).reshape(1, SF)   # (1, S*F)
    x2d = x.reshape(B, SF)
    if SF_pad != SF:
        pad = SF_pad - SF
        x2d = jnp.pad(x2d, ((0, 0), (0, pad)))
        pe_row = jnp.pad(pe_row, ((0, 0), (0, pad)))

    itemsize = jnp.dtype(x.dtype).itemsize
    tb = _choose_tb(B, SF_pad * itemsize, itemsize, target_bytes, min_steps)
    grid = (pl.cdiv(B, tb),)

    out2d = pl.pallas_call(
        _pe_add_kernel,
        out_shape=jax.ShapeDtypeStruct((B, SF_pad), x.dtype),
        grid_spec=pltpu.PrefetchScalarGridSpec(
            num_scalar_prefetch=0,
            grid=grid,
            in_specs=[
                pl.BlockSpec((tb, SF_pad), lambda b: (b, 0)),
                # Constant block index -> pe row DMA'd once, stays VMEM-resident.
                pl.BlockSpec((1, SF_pad), lambda b: (0, 0)),
            ],
            out_specs=pl.BlockSpec((tb, SF_pad), lambda b: (b, 0)),
        ),
        # Output aliases x2d; combined with caller-side donation this removes the
        # extra full-size output allocation and its HBM traffic.
        input_output_aliases={0: 0},
        compiler_params=pltpu.CompilerParams(
            dimension_semantics=("parallel",),
            vmem_limit_bytes=vmem_limit,
        ),
    )(x2d, pe_row)

    if SF_pad != SF:
        out2d = out2d[:, :SF]
    return out2d.reshape(B, S, F)


# ----------------------------------------------------------------------------
# Pure-JAX reference for correctness check
# ----------------------------------------------------------------------------
def positional_encoding_ref(x, pos_embedding):
    return x + pos_embedding[:, : x.shape[1]]


if __name__ == "__main__":
    # Small shapes consistent with the module: N=22 joints, time_len=4,
    # ft_size=32, sequence length 8 (<= N*T = 88), batch 2.
    ft_size = 32
    time_len = 4
    att_type = "spatial"
    B, S = 2, 8

    pos_embedding = build_pos_embedding(ft_size, time_len, att_type)

    key = jax.random.PRNGKey(0)
    x = jax.random.normal(key, (B, S, ft_size), dtype=jnp.float32)

    # Reference is computed and materialized BEFORE the donating call, since
    # donation invalidates x's buffer handle afterwards.
    ref = jax.block_until_ready(positional_encoding_ref(x, pos_embedding))

    # Donate x so input_output_aliases={0: 0} actually removes the extra copy.
    forward = jax.jit(positional_encoding_forward, donate_argnums=(0,))
    out = jax.block_until_ready(forward(x, pos_embedding))

    np.testing.assert_allclose(np.asarray(out), np.asarray(ref), rtol=1e-6, atol=1e-6)

    print("KERNEL_OK")
</pallas_src>

<mosaic_0001>
module attributes {stable_mosaic.version = 11 : i64} {
  func.func @_pe_add_kernel(%arg0: i32, %arg1: memref<2x256xf32, #tpu.memory_space<vmem>>, %arg2: memref<1x256xf32, #tpu.memory_space<vmem>>, %arg3: memref<2x256xf32, #tpu.memory_space<vmem>>) attributes {dimension_semantics = [#tpu.dimension_semantics<parallel>], iteration_bounds = array<i64: 1>, scalar_prefetch = 0 : i64, scratch_operands = 0 : i64, tpu.core_type = #tpu.core_type<tc>, window_params = [{transform_indices = @transform_0, window_bounds = array<i64: 2, 256>}, {pipeline_mode = #tpu.pipeline_mode<synchronous>, transform_indices = @transform_1, window_bounds = array<i64: 1, 256>}, {transform_indices = @transform_2, window_bounds = array<i64: 2, 256>}]} {
    %c0 = arith.constant 0 : index
    %c0_0 = arith.constant 0 : index
    %0 = vector.load %arg1[%c0, %c0_0] : memref<2x256xf32, #tpu.memory_space<vmem>>, vector<2x256xf32>
    %c0_1 = arith.constant 0 : index
    %c0_2 = arith.constant 0 : index
    %1 = vector.load %arg2[%c0_1, %c0_2] : memref<1x256xf32, #tpu.memory_space<vmem>>, vector<1x256xf32>
    %2 = vector.broadcast %1 : vector<1x256xf32> to vector<2x256xf32>
    %3 = arith.addf %0, %2 : vector<2x256xf32>
    %c0_3 = arith.constant 0 : index
    %c0_4 = arith.constant 0 : index
    %4 = vector.load %arg3[%c0_3, %c0_4] : memref<2x256xf32, #tpu.memory_space<vmem>>, vector<2x256xf32>
    tpu.vector_store %arg3[%c0_3, %c0_4], %3 {strides = array<i32>} : memref<2x256xf32, #tpu.memory_space<vmem>>, vector<2x256xf32>,
    return
  }
  func.func @transform_0(%arg0: i32) -> (i32, i32) {
    %c0_i32 = arith.constant 0 : i32
    %c0_i32_0 = arith.constant 0 : i32
    return %arg0, %c0_i32 : i32, i32
  }
  func.func @transform_1(%arg0: i32) -> (i32, i32) {
    %c0_i32 = arith.constant 0 : i32
    %c0_i32_0 = arith.constant 0 : i32
    %c0_i32_1 = arith.constant 0 : i32
    return %c0_i32, %c0_i32_0 : i32, i32
  }
  func.func @transform_2(%arg0: i32) -> (i32, i32) {
    %c0_i32 = arith.constant 0 : i32
    %c0_i32_0 = arith.constant 0 : i32
    return %arg0, %c0_i32 : i32, i32
  }
}

</mosaic_0001>

<llo_original>
// kernel: squeeze.1
$region0: #{squeeze.1}
  %s0 = inlined_call_operand.vmem [shape: f32[1,8,32], index: 0, kind: input, shape index: {}]
  %s1 = inlined_call_operand.vmem [shape: f32[1,256], index: 1, kind: output, shape index: {}]
  $region1: #{squeeze.1} parent=0
    #allocation0 [shape = 'u8[8192]{0}', space=vmem, size = 0x2000, scoped, tag = 'scoped mem for output reshape']
    %s2 = smov 3
    %v3 = vld [vmem:[%s0] ss:$4 sm:%s2]
    %vm4 = vcmask 261120
    %5 = vst.msk [vmem:[#allocation0] ss:$8 sm:$0x3] %vm4, %v3
    %s6 = scalar_lea.vmem %s0, 3
    %s7 = smov 3
    %v8 = vld [vmem:[%s6] ss:$4 sm:%s7]
    %9 = vrot.lane.b32.xlu0 %v8, 96
    %v10 = vpop.permute.xlu0 %9
    %vm11 = vcmask 1048320
    %12 = vst.msk [vmem:[#allocation0] ss:$8 sm:$0x3] %vm11, %v10
    %s13 = scalar_lea.vmem %s0, 2
    %s14 = smov 3
    %v15 = vld [vmem:[%s13] ss:$4 sm:%s14]
    %16 = vrot.lane.b32.xlu0 %v15, 64
    %v17 = vpop.permute.xlu0 %16
    %vm18 = vcmask 785920
    %19 = vst.msk [vmem:[#allocation0] ss:$8 sm:$0x3] %vm18, %v17
    %s20 = scalar_lea.vmem %s0, 1
    %s21 = smov 3
    %v22 = vld [vmem:[%s20] ss:$4 sm:%s21]
    %23 = vrot.lane.b32.xlu0 %v22, 32
    %v24 = vpop.permute.xlu0 %23
    %vm25 = vcmask 523520
    %26 = vst.msk [vmem:[#allocation0] ss:$8 sm:$0x3] %vm25, %v24
    %s28 = sshllo.u32 0, 1
    %v30 = vld [vmem:[#allocation0] sm:%s28]
    %s31 = sshllo.u32 0, 1
    %32 = vst [vmem:[%s1] sm:%s31] %v30
    %s33 = scalar_lea.vmem [#allocation0], 8
    %v34 = vld [vmem:[%s33] sm:%s28]
    %s35 = sshllo.u32 0, 1
    %s36 = scalar_lea.vmem %s1, 1
    %37 = vst [vmem:[%s36] sm:%s35] %v34

// kernel: positional_encoding_forward.1
$region0: #{positional_encoding_forward.1}
  #allocation0 [shape = 'u32[]', space=smem, size = 0x4, offset = 0x4, fixed_abs, tag = 'smem constant byte address 0x4 - core index']
  #allocation1 [shape = 'u32[144,128]{1,0:T(1,128)}', space=vmem, size = 0x12000, scoped, tag = 'internal scratch']
  %s0 = inlined_call_operand.vmem [shape: f32[2,256], index: 0, kind: input, shape index: {}, may-alias: {0,2}]
  %s1 = inlined_call_operand.vmem [shape: f32[1,256], index: 1, kind: input, shape index: {}]
  %s2 = inlined_call_operand.vmem [shape: f32[2,256], index: 2, kind: output, shape index: {}, may-alias: {0,2}]
  %s3 = sld [smem:[#allocation0]]
  $region18: #{positional_encoding_forward.1} parent=0
    _
  %s5 = ssub.s32 1, %s3
  %s6 = scalar_select 0, %s5, %s3
  // Predicated region
  $region2: #{positional_encoding_forward.1} parent=0 // pred_check
    _
  $region3: #{positional_encoding_forward.1} parent=0 // pred_check_branch
    %8 = sbr.rel (0) target = $region5
  $region4: #{positional_encoding_forward.1} parent=0 // pred_region
    _
  $region5: #{positional_encoding_forward.1} parent=0 // pred_fallthru
    _
  // Predicated region
  $region6: #{positional_encoding_forward.1} parent=0 // pred_check
    _
  $region7: #{positional_encoding_forward.1} parent=0 // pred_check_branch
    %10 = sbr.rel (0) target = $region9
  $region8: #{positional_encoding_forward.1} parent=0 // pred_region
    _
  $region9: #{positional_encoding_forward.1} parent=0 // pred_fallthru
    _
  %v11 = vld [vmem:[%s0] sm:$0xf]
  %v12 = vld [vmem:[%s1] sm:$0x3]
  %v14 = vlaneseq
  %v15 = vshrl.u32 %v14, 7
  %v16 = vsub.s32 0, %v15
  %v17 = vrot.slane %v12, %v16
  %v18 = vlaneseq
  %v19 = vshrl.u32 %v18, 7
  %v20 = vsub.s32 1, %v19
  %v21 = vrot.slane %v12, %v20
  %v22 = vcombine.low %v17, %v21
  %v24 = vunpack.c.l.s4 1983009808
  %v25 = vunpack.c.0.s8 %v24
  %v26 = vlaneseq
  %v27 = vshrl.u32 %v26, 7
  %v28 = vsub.s32 %v25, %v27
  %v29 = vrot.slane %v22, %v28
  %v31 = vadd.f32 %v11, %v29
  %32 = vst [vmem:[%s2] sm:$0xf] %v31
  // Predicated region
  $region10: #{positional_encoding_forward.1} parent=0 // pred_check
    _
  $region11: #{positional_encoding_forward.1} parent=0 // pred_check_branch
    %34 = sbr.rel (0) target = $region13
  $region12: #{positional_encoding_forward.1} parent=0 // pred_region
    _
  $region13: #{positional_encoding_forward.1} parent=0 // pred_fallthru
    _
  // Predicated region
  $region14: #{positional_encoding_forward.1} parent=0 // pred_check
    _
  $region15: #{positional_encoding_forward.1} parent=0 // pred_check_branch
    %36 = sbr.rel (0) target = $region17
  $region16: #{positional_encoding_forward.1} parent=0 // pred_region
    _
  $region17: #{positional_encoding_forward.1} parent=0 // pred_fallthru
    _

</llo_original>
